<compile_context>
chip_gen: v7x
topology: tpu7x:2x2x1
jax: 0.10.0
libtpu: 0.0.40
codegen_flags: <defaults>
</compile_context>

<pallas_src>
import functools
import math

import jax
import jax.numpy as jnp
import numpy as np
from jax.experimental import pallas as pl
from jax.experimental.pallas import tpu as pltpu


# ----------------------------- kernels --------------------------------------


def _add_pe_kernel(x_ref, pe_ref, o_ref):
    # x_ref: (Bt, N), pe_ref: (1, N) -> broadcast over rows.
    o_ref[...] = (x_ref[...] + pe_ref[...]).astype(o_ref.dtype)


def _add_pe_dropout_kernel(x_ref, pe_ref, bits_ref, o_ref, *, keep_thresh, scale):
    # x_ref: (Bt, N), pe_ref: (1, N), bits_ref: (Bt, N) uint32
    y = x_ref[...] + pe_ref[...]
    keep = bits_ref[...] < jnp.uint32(keep_thresh)      # P(keep) = 1 - p
    y = jnp.where(keep, y * scale, jnp.zeros_like(y))   # inverted dropout
    o_ref[...] = y.astype(o_ref.dtype)


# --------------------------- pe table (buffer) -------------------------------


def make_pe_table(d_model: int, max_len: int = 50) -> jnp.ndarray:
    """Builds the (max_len, d_model) sinusoidal table exactly like the module."""
    position = jnp.arange(max_len, dtype=jnp.float32)[:, None]            # (L, 1)
    div_term = jnp.exp(
        jnp.arange(0, d_model, 2, dtype=jnp.float32) * (-math.log(10000.0) / d_model)
    )                                                                      # (D/2,)
    pe = jnp.zeros((max_len, d_model), dtype=jnp.float32)
    pe = pe.at[:, 0::2].set(jnp.sin(position * div_term))
    pe = pe.at[:, 1::2].set(jnp.cos(position * div_term))
    return pe


# ------------------------------ wrapper --------------------------------------


def _pick_row_tile(n_rows: int, bytes_per_row: int, budget_bytes: int = 2 << 20) -> int:
    """Largest row tile that (a) fits the budget, (b) satisfies the (8,128) rule."""
    if n_rows * bytes_per_row <= budget_bytes:
        return n_rows                                   # whole array = one block
    bt = max(1, budget_bytes // max(1, bytes_per_row))
    bt = max(8, (bt // 8) * 8)                          # multiple of 8 sublanes
    return min(bt, n_rows)


def positional_encoding(x, pe_table, *, key=None, p: float = 0.1,
                        training: bool = False):
    """x: (B, S, D).  Returns (B, S, D) = Dropout(p)(x + pe[:S])."""
    B, S, D = x.shape
    N = S * D

    # Lane-dense layout plumbing (outside the kernel): last dim N is a
    # multiple of 128 as long as D*S is (256 in the demo).
    x2 = x.reshape(B, N)
    pe2 = pe_table[:S, :].reshape(1, N).astype(x.dtype)

    bt = _pick_row_tile(B, N * x2.dtype.itemsize)
    grid = (pl.cdiv(B, bt),)

    row_spec = pl.BlockSpec((bt, N), lambda i: (i, 0))
    pe_spec = pl.BlockSpec((1, N), lambda i: (0, 0))   # constant block per step
    cparams = pltpu.CompilerParams(dimension_semantics=("parallel",))

    use_dropout = training and p > 0.0
    if use_dropout and p >= 1.0:
        # PyTorch Dropout(p=1.0) zeroes everything in train mode.
        return jnp.zeros_like(x)

    if not use_dropout:
        out2 = pl.pallas_call(
            _add_pe_kernel,
            out_shape=jax.ShapeDtypeStruct((B, N), x.dtype),
            grid=grid,
            in_specs=[row_spec, pe_spec],
            out_specs=row_spec,
            compiler_params=cparams,
        )(x2, pe2)
        return out2.reshape(B, S, D)

    if key is None:
        key = jax.random.PRNGKey(0)
    # Random bits generated once in plain JAX (deterministic under `key`);
    # threshold compare + scale/zero happens inside the kernel.
    bits = jax.random.bits(key, shape=(B, N), dtype=jnp.uint32)
    keep_thresh = int((1.0 - p) * float(2**32))          # P(bits < thresh) = 1-p
    scale = 1.0 / (1.0 - p)

    kernel = functools.partial(
        _add_pe_dropout_kernel, keep_thresh=keep_thresh, scale=scale
    )
    out2 = pl.pallas_call(
        kernel,
        out_shape=jax.ShapeDtypeStruct((B, N), x.dtype),
        grid=grid,
        in_specs=[row_spec, pe_spec, row_spec],
        out_specs=row_spec,
        compiler_params=cparams,
    )(x2, pe2, bits)
    return out2.reshape(B, S, D)


# -------------------------------- demo ---------------------------------------


if __name__ == "__main__":
    B, S, D, MAX_LEN, P = 2, 8, 32, 50, 0.1
    key = jax.random.PRNGKey(0)
    x = jax.random.normal(key, (B, S, D), dtype=jnp.float32)

    pe_table = make_pe_table(D, MAX_LEN)

    # eval mode (dropout = identity) — check against pure-JAX reference
    out_eval = positional_encoding(x, pe_table, p=P, training=False)
    out_eval = jax.block_until_ready(out_eval)
    ref = x + pe_table[None, :S, :]
    np.testing.assert_allclose(np.asarray(out_eval), np.asarray(ref),
                               rtol=1e-6, atol=1e-6)

    # train mode (inverted dropout applied inside the kernel)
    dkey = jax.random.PRNGKey(123)
    out_train = positional_encoding(x, pe_table, key=dkey, p=P, training=True)
    out_train = jax.block_until_ready(out_train)
    assert out_train.shape == (B, S, D)
    # every element is either 0 or (x+pe)/(1-p)
    ot = np.asarray(out_train)
    rf = np.asarray(ref) / (1.0 - P)
    ok = np.isclose(ot, 0.0, atol=1e-6) | np.isclose(ot, rf, rtol=1e-5, atol=1e-6)
    assert ok.all()

    print("KERNEL_OK")
</pallas_src>

<mosaic_0001>
module attributes {stable_mosaic.version = 11 : i64} {
  func.func @_add_pe_kernel(%arg0: i32, %arg1: memref<2x256xf32, #tpu.memory_space<vmem>>, %arg2: memref<1x256xf32, #tpu.memory_space<vmem>>, %arg3: memref<2x256xf32, #tpu.memory_space<vmem>>) attributes {dimension_semantics = [#tpu.dimension_semantics<parallel>], iteration_bounds = array<i64: 1>, scalar_prefetch = 0 : i64, scratch_operands = 0 : i64, tpu.core_type = #tpu.core_type<tc>, window_params = [{transform_indices = @transform_0, window_bounds = array<i64: 2, 256>}, {pipeline_mode = #tpu.pipeline_mode<synchronous>, transform_indices = @transform_1, window_bounds = array<i64: 1, 256>}, {transform_indices = @transform_2, window_bounds = array<i64: 2, 256>}]} {
    %c0 = arith.constant 0 : index
    %c0_0 = arith.constant 0 : index
    %0 = vector.load %arg1[%c0, %c0_0] : memref<2x256xf32, #tpu.memory_space<vmem>>, vector<2x256xf32>
    %c0_1 = arith.constant 0 : index
    %c0_2 = arith.constant 0 : index
    %1 = vector.load %arg2[%c0_1, %c0_2] : memref<1x256xf32, #tpu.memory_space<vmem>>, vector<1x256xf32>
    %2 = vector.broadcast %1 : vector<1x256xf32> to vector<2x256xf32>
    %3 = arith.addf %0, %2 : vector<2x256xf32>
    %c0_3 = arith.constant 0 : index
    %c0_4 = arith.constant 0 : index
    %4 = vector.load %arg3[%c0_3, %c0_4] : memref<2x256xf32, #tpu.memory_space<vmem>>, vector<2x256xf32>
    tpu.vector_store %arg3[%c0_3, %c0_4], %3 {strides = array<i32>} : memref<2x256xf32, #tpu.memory_space<vmem>>, vector<2x256xf32>,
    return
  }
  func.func @transform_0(%arg0: i32) -> (i32, i32) {
    %c0_i32 = arith.constant 0 : i32
    %c0_i32_0 = arith.constant 0 : i32
    return %arg0, %c0_i32 : i32, i32
  }
  func.func @transform_1(%arg0: i32) -> (i32, i32) {
    %c0_i32 = arith.constant 0 : i32
    %c0_i32_0 = arith.constant 0 : i32
    %c0_i32_1 = arith.constant 0 : i32
    return %c0_i32, %c0_i32_0 : i32, i32
  }
  func.func @transform_2(%arg0: i32) -> (i32, i32) {
    %c0_i32 = arith.constant 0 : i32
    %c0_i32_0 = arith.constant 0 : i32
    return %arg0, %c0_i32 : i32, i32
  }
}

</mosaic_0001>

<llo_original>
// kernel: tpu_custom_call.1
$region0: #{tpu_custom_call.1}
  #allocation0 [shape = 'u32[]', space=smem, size = 0x4, offset = 0x4, fixed_abs, tag = 'smem constant byte address 0x4 - core index']
  #allocation1 [shape = 'u32[144,128]{1,0:T(1,128)}', space=vmem, size = 0x12000, scoped, tag = 'internal scratch']
  %s0 = inlined_call_operand.hbm [shape: f32[2,256], index: 0, kind: input, shape index: {}]
  %s1 = inlined_call_operand.vmem [shape: f32[1,256], index: 1, kind: input, shape index: {}]
  %s2 = inlined_call_operand.hbm [shape: f32[2,256], index: 2, kind: output, shape index: {}]
  %s3 = sld [smem:[#allocation0]]
  $region22: #{tpu_custom_call.1} parent=0
    _
  %s5 = ssub.s32 1, %s3
  %s6 = scalar_select 0, %s5, %s3
  $region1: #{tpu_custom_call.1} parent=0
    #allocation2 [shape = 'u8[2048]{0}', space=vmem, size = 0x800, scoped, tag = 'input window, operand 0, single buffered']
    #allocation3 [shape = 's32[1]{0}', space=sflag, size = 0x4, scoped, tag = 'scoped memory for tpu_custom_call.1']
    #allocation4 [shape = 's32[1]{0}', space=sflag, size = 0x4, scoped, tag = 'scoped memory for tpu_custom_call.1']
    #allocation5 [shape = 'u8[2048]{0}', space=vmem, size = 0x800, scoped, tag = 'output window, operand 0, single buffered']
    %7 = vsyncpa [#allocation3], 0
    %8 = vsyncpa [#allocation4], 0
    // Predicated region
    $region2: #{tpu_custom_call.1} parent=1 // pred_check
      _
    $region3: #{tpu_custom_call.1} parent=1 // pred_check_branch
      %10 = sbr.rel (0) target = $region5
    $region4: #{tpu_custom_call.1} parent=1 // pred_region
      %s12 = ssub.s32 64, 64
      %13 = vsyncadd [#allocation3], %s12
      %s15 = sshll.u32 [#allocation2], 4
      %s16 = int_to_ptr.vmem [resolvable:$true] %s15
      %18 = dma.hbm_to_vmem [thread:$0]  %s0, 64, %s16, [#allocation3]
    $region5: #{tpu_custom_call.1} parent=1 // pred_fallthru
      _
    // Predicated region
    $region6: #{tpu_custom_call.1} parent=1 // pred_check
      _
    $region7: #{tpu_custom_call.1} parent=1 // pred_check_branch
      %20 = sbr.rel (0) target = $region9
    $region8: #{tpu_custom_call.1} parent=1 // pred_region
      _
    $region9: #{tpu_custom_call.1} parent=1 // pred_fallthru
      _
    // Predicated region
    $region10: #{tpu_custom_call.1} parent=1 // pred_check
      _
    $region11: #{tpu_custom_call.1} parent=1 // pred_check_branch
      %22 = sbr.rel (0) target = $region13
    $region12: #{tpu_custom_call.1} parent=1 // pred_region
      %23 = dma.done [#allocation3], 64
    $region13: #{tpu_custom_call.1} parent=1 // pred_fallthru
      _
    %v24 = vld [vmem:[#allocation2] sm:$0xf]
    %v25 = vld [vmem:[%s1] sm:$0x3]
    %v27 = vlaneseq
    %v28 = vshrl.u32 %v27, 7
    %v29 = vsub.s32 0, %v28
    %v30 = vrot.slane %v25, %v29
    %v31 = vlaneseq
    %v32 = vshrl.u32 %v31, 7
    %v33 = vsub.s32 1, %v32
    %v34 = vrot.slane %v25, %v33
    %v35 = vcombine.low %v30, %v34
    %v37 = vunpack.c.l.s4 1983009808
    %v38 = vunpack.c.0.s8 %v37
    %v39 = vlaneseq
    %v40 = vshrl.u32 %v39, 7
    %v41 = vsub.s32 %v38, %v40
    %v42 = vrot.slane %v35, %v41
    %v44 = vadd.f32 %v24, %v42
    %45 = vst [vmem:[#allocation5] sm:$0xf] %v44
    // Predicated region
    $region14: #{tpu_custom_call.1} parent=1 // pred_check
      _
    $region15: #{tpu_custom_call.1} parent=1 // pred_check_branch
      %47 = sbr.rel (0) target = $region17
    $region16: #{tpu_custom_call.1} parent=1 // pred_region
      %s49 = ssub.s32 64, 64
      %50 = vsyncadd [#allocation4], %s49
      %s52 = sshll.u32 [#allocation5], 4
      %s53 = int_to_ptr.vmem [resolvable:$true] %s52
      %55 = dma.vmem_to_hbm [thread:$0]  %s53, 64, %s2, [#allocation4]
    $region17: #{tpu_custom_call.1} parent=1 // pred_fallthru
      _
    // Predicated region
    $region18: #{tpu_custom_call.1} parent=1 // pred_check
      _
    $region19: #{tpu_custom_call.1} parent=1 // pred_check_branch
      %57 = sbr.rel (0) target = $region21
    $region20: #{tpu_custom_call.1} parent=1 // pred_region
      %58 = dma.done [#allocation4], 64
    $region21: #{tpu_custom_call.1} parent=1 // pred_fallthru
      _
    %59 = vsyncpa [#allocation3], 1
    %60 = vsyncpa [#allocation4], 1

</llo_original>
